<compile_context>
chip_gen: v5e
topology: v5e:2x2
jax: 0.10.0
libtpu: 0.0.40
codegen_flags: <defaults>
</compile_context>

<pallas_src>
import functools

import jax
import jax.numpy as jnp
from jax.experimental import pallas as pl
from jax.experimental.pallas import tpu as pltpu


# ---------------------------------------------------------------------------
# Small helpers
# ---------------------------------------------------------------------------

def _round_up(x, m):
    return (x + m - 1) // m * m


def _vmem_limit_bytes():
    """Per-generation scoped-VMEM limit with headroom (review: no hardcoded 32MiB)."""
    try:
        cap = pltpu.get_tpu_info().vmem_capacity_bytes
    except Exception:
        return 32 * 1024 * 1024
    # ~3/4 of physical, capped at 96 MiB (v5e/v6e: 96 MiB, v7x: 48 MiB).
    return int(min(cap * 3 // 4, 96 * 1024 * 1024))


def _use_bf16_exp():
    """bf16 EUP exp only on v6e / v7x (v5e and older lack bf16 EUP/VPU)."""
    try:
        kind = jax.devices()[0].device_kind.lower()
    except Exception:
        return False
    return ("v6" in kind) or ("v7" in kind)


def _resident_spec(shape, single_buffer):
    """BlockSpec for a grid-invariant operand; single-buffered when possible."""
    idx = lambda i: (0,) * len(shape)
    if single_buffer:
        return pl.BlockSpec(shape, idx, pipeline_mode=pl.Buffered(1))
    return pl.BlockSpec(shape, idx)


def _fit_rows(max_tile, vmem_limit, a_pad, d_pad, per_row_bytes):
    """Largest row tile (multiple of 16, <= max_tile) fitting the VMEM budget."""
    w_bytes = d_pad * a_pad * 2 + a_pad * 4            # resident W (bf16) + bias
    budget = int(vmem_limit * 0.75) - w_bytes
    tn = budget // max(per_row_bytes, 1)
    return min(max_tile, max(16, (tn // 16) * 16))


def _choose_tn(n, max_tile):
    """Row tile for batch n; prefer >=2 tiles so the parallel axis spans 2 TCs."""
    n16 = _round_up(max(n, 1), 16)
    tn = min(max_tile, n16)
    if tn == n16 and n16 >= 32:                         # single tile -> split in 2
        tn = _round_up((n16 + 1) // 2, 16)
    return tn


# ---------------------------------------------------------------------------
# Kernels
# ---------------------------------------------------------------------------

def _predict_kernel(x_ref, w_ref, b_ref, score_ref):
    # x: (TN, D_pad) bf16, w: (D_pad, A_pad) bf16 resident, b: (1, A_pad) f32.
    score = jnp.dot(x_ref[...], w_ref[...], preferred_element_type=jnp.float32)
    score_ref[...] = (score + b_ref[...]).astype(score_ref.dtype)   # lane-dense bf16


def _train_kernel(x_ref, w_ref, b_ref, tgt_ref, mask_ref, ce_ref, *, bf16_exp):
    # Linear: score = x @ W^T + b  (MXU, bf16 in / f32 accumulate).
    score = jnp.dot(x_ref[...], w_ref[...],
                    preferred_element_type=jnp.float32) + b_ref[...]

    # Stable logsumexp. Padded A columns carry bias -1e30 -> exp underflows to 0.
    m = jnp.max(score, axis=-1, keepdims=True)                        # (TN, 1)
    z = score - m
    if bf16_exp:
        p = jnp.exp(z.astype(jnp.bfloat16)).astype(jnp.float32)       # EUP in bf16
    else:
        p = jnp.exp(z)
    lse = jnp.log(jnp.sum(p, axis=-1, keepdims=True)) + m             # (TN, 1)

    # Gather the target logit via masked sum (targets < true app_size, so padded
    # columns never match).
    tgt = tgt_ref[...]                                                # (TN, 1) i32
    col = jax.lax.broadcasted_iota(jnp.int32, score.shape, 1)         # (TN, A_pad)
    tgt_logit = jnp.sum(jnp.where(col == tgt, score, 0.0),
                        axis=-1, keepdims=True)                       # (TN, 1)

    # Per-row CE partials; padded rows masked to 0.  (No serial accumulator ->
    # the N grid axis stays fully parallel across TensorCores.)
    ce_ref[...] = (lse - tgt_logit) * mask_ref[...]


# ---------------------------------------------------------------------------
# pallas_call wrappers
# ---------------------------------------------------------------------------

def _predict_call(x_bf16, w_bf16, b_f32, tn, out_dtype, vmem_limit):
    n_pad, d_pad = x_bf16.shape
    a_pad = w_bf16.shape[1]

    def run(single_buffer):
        call = pl.pallas_call(
            _predict_kernel,
            out_shape=jax.ShapeDtypeStruct((n_pad, a_pad), out_dtype),
            grid=(n_pad // tn,),
            in_specs=[
                pl.BlockSpec((tn, d_pad), lambda i: (i, 0)),          # x tiled over N
                _resident_spec((d_pad, a_pad), single_buffer),        # W resident
                _resident_spec((1, a_pad), single_buffer),            # b resident
            ],
            out_specs=pl.BlockSpec((tn, a_pad), lambda i: (i, 0)),
            compiler_params=pltpu.CompilerParams(
                dimension_semantics=("parallel",),
                vmem_limit_bytes=vmem_limit,
            ),
        )
        return jax.block_until_ready(call(x_bf16, w_bf16, b_f32))

    try:
        return run(True)
    except Exception:   # fallback if single-buffering (pl.Buffered(1)) rejected
        return run(False)


def _train_call(x_bf16, w_bf16, b_f32, tgt_i32, mask_f32, tn, bf16_exp, vmem_limit):
    n_pad, d_pad = x_bf16.shape
    a_pad = w_bf16.shape[1]
    kernel = functools.partial(_train_kernel, bf16_exp=bf16_exp)

    def run(single_buffer):
        call = pl.pallas_call(
            kernel,
            out_shape=jax.ShapeDtypeStruct((n_pad, 1), jnp.float32),  # per-row CE
            grid=(n_pad // tn,),
            in_specs=[
                pl.BlockSpec((tn, d_pad), lambda i: (i, 0)),          # x
                _resident_spec((d_pad, a_pad), single_buffer),        # W resident
                _resident_spec((1, a_pad), single_buffer),            # b resident
                pl.BlockSpec((tn, 1), lambda i: (i, 0)),              # targets
                pl.BlockSpec((tn, 1), lambda i: (i, 0)),              # row-valid mask
            ],
            out_specs=pl.BlockSpec((tn, 1), lambda i: (i, 0)),
            compiler_params=pltpu.CompilerParams(
                dimension_semantics=("parallel",),                    # independent tiles
                vmem_limit_bytes=vmem_limit,
            ),
        )
        return jax.block_until_ready(call(x_bf16, w_bf16, b_f32, tgt_i32, mask_f32))

    try:
        return run(True)
    except Exception:
        return run(False)


# ---------------------------------------------------------------------------
# Model
# ---------------------------------------------------------------------------

class AppPreUserGtmPallas:
    """JAX/Pallas port of AppPreUserGtm (baseline: time + user, app emb zeroed)."""

    MAX_PREDICT_ROWS = 512
    MAX_TRAIN_ROWS = 256

    def __init__(self, app_size, uid_size, hid_dim, dropout_p=0.1, seed=0,
                 predict_dtype=jnp.bfloat16):
        self.app_size = app_size
        self.uid_size = uid_size
        self.hid_dim = hid_dim
        self.app_emb_size = hid_dim
        self.uid_emb_size = hid_dim
        self.input_size = 24 + self.app_emb_size + self.uid_emb_size
        self.dropout_p = dropout_p            # eval mode -> identity
        self.predict_dtype = predict_dtype    # bf16 score: predict is writeback-bound

        # Padded kernel geometry (lane / MXU friendly).
        self.d_pad = _round_up(self.input_size, 128)
        self.a_pad = _round_up(self.app_size, 128)

        # Per-generation VMEM budget + tile caps (also covers v7x's 64 MiB VMEM).
        self._vmem_limit = _vmem_limit_bytes()
        self._bf16_exp = _use_bf16_exp()
        out_bytes = jnp.dtype(self.predict_dtype).itemsize
        self._max_predict_rows = _fit_rows(
            self.MAX_PREDICT_ROWS, self._vmem_limit, self.a_pad, self.d_pad,
            per_row_bytes=2 * self.a_pad * out_bytes + 4 * self.d_pad + 4 * self.a_pad)
        self._max_train_rows = _fit_rows(
            self.MAX_TRAIN_ROWS, self._vmem_limit, self.a_pad, self.d_pad,
            per_row_bytes=16 * self.a_pad + 4 * self.d_pad + 32)

        k = jax.random.PRNGKey(seed)
        k_uid, k_app, k_w, k_b = jax.random.split(k, 4)
        # deterministic synthetic parameters (shapes match the PyTorch module)
        self.emb_uid = jax.random.normal(k_uid, (uid_size, self.uid_emb_size),
                                         dtype=jnp.float32)
        self.emb_app = jax.random.normal(k_app, (app_size, self.app_emb_size),
                                         dtype=jnp.float32)   # unused in forward
        bound = 1.0 / float(jnp.sqrt(self.input_size))
        self.dec_w = jax.random.uniform(k_w, (app_size, self.input_size),
                                        minval=-bound, maxval=bound,
                                        dtype=jnp.float32)    # nn.Linear weight (A, D_in)
        self.dec_b = jax.random.uniform(k_b, (app_size,),
                                        minval=-bound, maxval=bound,
                                        dtype=jnp.float32)

        # Pre-transpose + pad + cast the decoder weight ONCE (kernel-side form).
        w_t = jnp.zeros((self.d_pad, self.a_pad), dtype=jnp.float32)
        w_t = w_t.at[:self.input_size, :self.app_size].set(self.dec_w.T)
        self._w_kernel = w_t.astype(jnp.bfloat16)             # (D_pad, A_pad) bf16
        # Predict bias: 0 in padded columns (safe in bf16; columns sliced off).
        self._b_predict = (jnp.zeros((1, self.a_pad), jnp.float32)
                           .at[0, :self.app_size].set(self.dec_b))
        # Train bias: -1e30 in padded columns so they vanish from the logsumexp.
        self._b_train = (jnp.full((1, self.a_pad), -1e30, jnp.float32)
                         .at[0, :self.app_size].set(self.dec_b))

    # -- wrapper-side feature assembly (single pass, no concat/zero app_emb) --
    def _build_x(self, tim, uid, n_pad):
        N = tim.shape[0]
        tim2 = jnp.squeeze(tim, axis=1).astype(jnp.bfloat16)          # (N, 24)
        uid_emb = self.emb_uid[jnp.reshape(uid, (-1,))].astype(jnp.bfloat16)  # (N, hid)
        x = jnp.zeros((n_pad, self.d_pad), dtype=jnp.bfloat16)
        x = x.at[:N, :24].set(tim2)
        # columns [24, 24+hid) stay zero (torch uses a zero app embedding)
        x = x.at[:N, 24 + self.app_emb_size:self.input_size].set(uid_emb)
        # TODO(synk): dropout is eval-mode identity only.
        return x

    def __call__(self, tim, app, uid, targets, mode):
        # tim: (N, 1, 24) float, app: (N, ...) (only its length matters),
        # uid: (N, 1) int, targets: (N,) int
        N = tim.shape[0]

        if mode == 'predict':
            tn = _choose_tn(N, self._max_predict_rows)
            n_pad = _round_up(N, tn)
            x = self._build_x(tim, uid, n_pad)
            score = _predict_call(x, self._w_kernel, self._b_predict, tn,
                                  self.predict_dtype, self._vmem_limit)
            if n_pad == N and self.a_pad == self.app_size:
                return score                       # no slice copy needed
            # TODO(synk): this slice materializes a copy; keep app_size a
            # multiple of 128 (and N a multiple of the row tile), or consume
            # the padded block inside the caller's jit, to avoid it.
            return score[:N, :self.app_size]

        # train: mean cross-entropy
        tn = _choose_tn(N, self._max_train_rows)
        n_pad = _round_up(N, tn)
        x = self._build_x(tim, uid, n_pad)
        tgt = (jnp.zeros((n_pad, 1), dtype=jnp.int32)
               .at[:N, 0].set(jnp.reshape(targets, (-1,)).astype(jnp.int32)))
        mask = (jnp.arange(n_pad) < N).astype(jnp.float32).reshape(-1, 1)
        ce = _train_call(x, self._w_kernel, self._b_train, tgt, mask, tn,
                         self._bf16_exp, self._vmem_limit)
        return jnp.sum(ce) / N


# ---------------------------------------------------------------------------
# Self-test
# ---------------------------------------------------------------------------

if __name__ == "__main__":
    # app_size chosen as a multiple of 128 so the predict output needs no slice.
    app_size, uid_size, hid_dim = 128, 16, 32
    N = 16

    model = AppPreUserGtmPallas(app_size, uid_size, hid_dim, seed=0)

    key = jax.random.PRNGKey(0)
    k_tim, k_app, k_uid, k_tgt = jax.random.split(key, 4)
    tim = jax.random.normal(k_tim, (N, 1, 24), dtype=jnp.float32)
    app = jax.random.randint(k_app, (N, 4), 0, app_size)   # only len(app) is used
    uid = jax.random.randint(k_uid, (N, 1), 0, uid_size)
    targets = jax.random.randint(k_tgt, (N,), 0, app_size)

    score = model(tim, app, uid, targets, mode='predict')
    loss = model(tim, app, uid, targets, mode='train')
    jax.block_until_ready(score)
    jax.block_until_ready(loss)

    # pure-JAX reference with matching bf16 matmul inputs / f32 accumulation
    x_ref = jnp.concatenate(
        (jnp.squeeze(tim, 1),
         jnp.zeros((N, hid_dim), jnp.float32),
         model.emb_uid[jnp.reshape(uid, (-1,))]), axis=1)
    x_b = x_ref.astype(jnp.bfloat16).astype(jnp.float32)
    w_b = model.dec_w.astype(jnp.bfloat16).astype(jnp.float32)
    score_ref = x_b @ w_b.T + model.dec_b
    lse = jax.nn.logsumexp(score_ref, axis=-1)
    loss_ref = jnp.mean(lse - score_ref[jnp.arange(N), targets])

    assert score.shape == (N, app_size) and score.dtype == model.predict_dtype, \
        (score.shape, score.dtype)
    score_f32 = score.astype(jnp.float32)
    assert jnp.allclose(score_f32, score_ref, atol=3e-2, rtol=2e-2), \
        float(jnp.max(jnp.abs(score_f32 - score_ref)))

    loss_tol = 5e-2 if model._bf16_exp else 2e-3   # bf16 exp path is slightly looser
    assert jnp.allclose(loss, loss_ref, atol=loss_tol, rtol=loss_tol), \
        (float(loss), float(loss_ref))

    print("KERNEL_OK")
</pallas_src>

<mosaic_0001>
module attributes {stable_mosaic.version = 11 : i64} {
  func.func @_predict_kernel(%arg0: i32, %arg1: memref<16x128xbf16, #tpu.memory_space<vmem>>, %arg2: memref<128x128xbf16, #tpu.memory_space<vmem>>, %arg3: memref<1x128xf32, #tpu.memory_space<vmem>>, %arg4: memref<16x128xbf16, #tpu.memory_space<vmem>>) attributes {dimension_semantics = [#tpu.dimension_semantics<parallel>], iteration_bounds = array<i64: 1>, scalar_prefetch = 0 : i64, scratch_operands = 0 : i64, tpu.core_type = #tpu.core_type<tc>, window_params = [{transform_indices = @transform_0, window_bounds = array<i64: 16, 128>}, {pipeline_mode = #tpu.pipeline_mode<synchronous>, transform_indices = @transform_1, window_bounds = array<i64: 128, 128>}, {pipeline_mode = #tpu.pipeline_mode<synchronous>, transform_indices = @transform_2, window_bounds = array<i64: 1, 128>}, {transform_indices = @transform_3, window_bounds = array<i64: 16, 128>}]} {
    %c0 = arith.constant 0 : index
    %c0_0 = arith.constant 0 : index
    %0 = vector.load %arg1[%c0, %c0_0] : memref<16x128xbf16, #tpu.memory_space<vmem>>, vector<16x128xbf16>
    %c0_1 = arith.constant 0 : index
    %c0_2 = arith.constant 0 : index
    %1 = vector.load %arg2[%c0_1, %c0_2] : memref<128x128xbf16, #tpu.memory_space<vmem>>, vector<128x128xbf16>
    %cst = arith.constant dense<0.000000e+00> : vector<16x128xf32>
    %2 = tpu.matmul %0, %1, %cst {dimension_numbers = #tpu.dot_dimension_numbers<[1], [0], [0], [1], [0, 0, 1, 1], [], []>} : vector<16x128xbf16>, vector<128x128xbf16>, vector<16x128xf32> -> vector<16x128xf32>
    %c0_3 = arith.constant 0 : index
    %c0_4 = arith.constant 0 : index
    %3 = vector.load %arg3[%c0_3, %c0_4] : memref<1x128xf32, #tpu.memory_space<vmem>>, vector<1x128xf32>
    %4 = vector.broadcast %3 : vector<1x128xf32> to vector<16x128xf32>
    %5 = arith.addf %2, %4 : vector<16x128xf32>
    %6 = arith.truncf %5 : vector<16x128xf32> to vector<16x128xbf16>
    %c0_5 = arith.constant 0 : index
    %c0_6 = arith.constant 0 : index
    %7 = vector.load %arg4[%c0_5, %c0_6] : memref<16x128xbf16, #tpu.memory_space<vmem>>, vector<16x128xbf16>
    tpu.vector_store %arg4[%c0_5, %c0_6], %6 {strides = array<i32>} : memref<16x128xbf16, #tpu.memory_space<vmem>>, vector<16x128xbf16>,
    return
  }
  func.func @transform_0(%arg0: i32) -> (i32, i32) {
    %c0_i32 = arith.constant 0 : i32
    %c0_i32_0 = arith.constant 0 : i32
    return %arg0, %c0_i32 : i32, i32
  }
  func.func @transform_1(%arg0: i32) -> (i32, i32) {
    %c0_i32 = arith.constant 0 : i32
    %c0_i32_0 = arith.constant 0 : i32
    %c0_i32_1 = arith.constant 0 : i32
    return %c0_i32, %c0_i32_0 : i32, i32
  }
  func.func @transform_2(%arg0: i32) -> (i32, i32) {
    %c0_i32 = arith.constant 0 : i32
    %c0_i32_0 = arith.constant 0 : i32
    %c0_i32_1 = arith.constant 0 : i32
    return %c0_i32, %c0_i32_0 : i32, i32
  }
  func.func @transform_3(%arg0: i32) -> (i32, i32) {
    %c0_i32 = arith.constant 0 : i32
    %c0_i32_0 = arith.constant 0 : i32
    return %arg0, %c0_i32 : i32, i32
  }
}

module attributes {stable_mosaic.version = 11 : i64} {
  func.func @_predict_kernel(%arg0: i32, %arg1: memref<16x128xbf16, #tpu.memory_space<vmem>>, %arg2: memref<128x128xbf16, #tpu.memory_space<vmem>>, %arg3: memref<1x128xf32, #tpu.memory_space<vmem>>, %arg4: memref<16x128xbf16, #tpu.memory_space<vmem>>) attributes {dimension_semantics = [#tpu.dimension_semantics<parallel>], iteration_bounds = array<i64: 1>, scalar_prefetch = 0 : i64, scratch_operands = 0 : i64, tpu.core_type = #tpu.core_type<tc>, window_params = [{transform_indices = @transform_0, window_bounds = array<i64: 16, 128>}, {pipeline_mode = #tpu.pipeline_mode<synchronous>, transform_indices = @transform_1, window_bounds = array<i64: 128, 128>}, {pipeline_mode = #tpu.pipeline_mode<synchronous>, transform_indices = @transform_2, window_bounds = array<i64: 1, 128>}, {transform_indices = @transform_3, window_bounds = array<i64: 16, 128>}]} {
    %c0 = arith.constant 0 : index
    %c0_0 = arith.constant 0 : index
    %0 = vector.load %arg1[%c0, %c0_0] : memref<16x128xbf16, #tpu.memory_space<vmem>>, vector<16x128xbf16>
    %c0_1 = arith.constant 0 : index
    %c0_2 = arith.constant 0 : index
    %1 = vector.load %arg2[%c0_1, %c0_2] : memref<128x128xbf16, #tpu.memory_space<vmem>>, vector<128x128xbf16>
    %cst = arith.constant dense<0.000000e+00> : vector<16x128xf32>
    %2 = tpu.matmul %0, %1, %cst {dimension_numbers = #tpu.dot_dimension_numbers<[1], [0], [0], [1], [0, 0, 1, 1], [], []>} : vector<16x128xbf16>, vector<128x128xbf16>, vector<16x128xf32> -> vector<16x128xf32>
    %c0_3 = arith.constant 0 : index
    %c0_4 = arith.constant 0 : index
    %3 = vector.load %arg3[%c0_3, %c0_4] : memref<1x128xf32, #tpu.memory_space<vmem>>, vector<1x128xf32>
    %4 = vector.broadcast %3 : vector<1x128xf32> to vector<16x128xf32>
    %5 = arith.addf %2, %4 : vector<16x128xf32>
    %6 = arith.truncf %5 : vector<16x128xf32> to vector<16x128xbf16>
    %c0_5 = arith.constant 0 : index
    %c0_6 = arith.constant 0 : index
    %7 = vector.load %arg4[%c0_5, %c0_6] : memref<16x128xbf16, #tpu.memory_space<vmem>>, vector<16x128xbf16>
    tpu.vector_store %arg4[%c0_5, %c0_6], %6 {strides = array<i32>} : memref<16x128xbf16, #tpu.memory_space<vmem>>, vector<16x128xbf16>,
    return
  }
  func.func @transform_0(%arg0: i32) -> (i32, i32) {
    %c0_i32 = arith.constant 0 : i32
    %c0_i32_0 = arith.constant 0 : i32
    return %arg0, %c0_i32 : i32, i32
  }
  func.func @transform_1(%arg0: i32) -> (i32, i32) {
    %c0_i32 = arith.constant 0 : i32
    %c0_i32_0 = arith.constant 0 : i32
    %c0_i32_1 = arith.constant 0 : i32
    return %c0_i32, %c0_i32_0 : i32, i32
  }
  func.func @transform_2(%arg0: i32) -> (i32, i32) {
    %c0_i32 = arith.constant 0 : i32
    %c0_i32_0 = arith.constant 0 : i32
    %c0_i32_1 = arith.constant 0 : i32
    return %c0_i32, %c0_i32_0 : i32, i32
  }
  func.func @transform_3(%arg0: i32) -> (i32, i32) {
    %c0_i32 = arith.constant 0 : i32
    %c0_i32_0 = arith.constant 0 : i32
    return %arg0, %c0_i32 : i32, i32
  }
}

</mosaic_0001>

<llo_original>
// kernel: tpu_custom_call.1
$region0: #{tpu_custom_call.1}
  #allocation0 [shape = 'u32[]', space=smem, size = 0x4, offset = 0x4, fixed_abs, tag = 'smem constant byte address 0x4 - core index']
  #allocation1 [shape = 'u32[72,128]{1,0:T(1,128)}', space=vmem, size = 0x9000, scoped, tag = 'internal scratch']
  %s0 = inlined_call_operand.hbm [shape: bf16[16,128], index: 0, kind: input, shape index: {}]
  %s1 = inlined_call_operand.hbm [shape: bf16[128,128], index: 1, kind: input, shape index: {}]
  %s2 = inlined_call_operand.vmem [shape: f32[1,128], index: 2, kind: input, shape index: {}]
  %s3 = inlined_call_operand.hbm [shape: bf16[16,128], index: 3, kind: output, shape index: {}]
  %s4 = sld [smem:[#allocation0]]
  $region30: #{tpu_custom_call.1} parent=0
    _
  %s6 = ssub.s32 1, %s4
  %s7 = scalar_select 0, %s6, %s4
  $region1: #{tpu_custom_call.1} parent=0
    #allocation2 [shape = 'u8[4096]{0}', space=vmem, size = 0x1000, scoped, tag = 'input window, operand 0, single buffered']
    #allocation3 [shape = 's32[1]{0}', space=sflag, size = 0x4, scoped, tag = 'scoped memory for tpu_custom_call.1']
    #allocation4 [shape = 's32[1]{0}', space=sflag, size = 0x4, scoped, tag = 'scoped memory for tpu_custom_call.1']
    #allocation5 [shape = 'u8[32768]{0}', space=vmem, size = 0x8000, scoped, tag = 'input window, operand 1, single buffered']
    #allocation6 [shape = 's32[1]{0}', space=sflag, size = 0x4, scoped, tag = 'scoped memory for tpu_custom_call.1']
    #allocation7 [shape = 'u8[4096]{0}', space=vmem, size = 0x1000, scoped, tag = 'output window, operand 0, single buffered']
    %8 = vsyncpa [#allocation3], 0
    %9 = vsyncpa [#allocation6], 0
    %10 = vsyncpa [#allocation4], 0
    // Predicated region
    $region2: #{tpu_custom_call.1} parent=1 // pred_check
      _
    $region3: #{tpu_custom_call.1} parent=1 // pred_check_branch
      %12 = sbr.rel (0) target = $region5
    $region4: #{tpu_custom_call.1} parent=1 // pred_region
      %14 = vsyncadd [#allocation3], 0
      %s15 = sshll.u32 %s0, 4
      %s16 = int_to_ptr.hbm [resolvable:$true] %s15
      %s17 = sshll.u32 [#allocation2], 4
      %s18 = int_to_ptr.vmem [resolvable:$true] %s17
      %23 = dma.hbm_to_vmem [thread:$0]  %s16, 128, %s18, [#allocation3], 64, 64, 4
    $region5: #{tpu_custom_call.1} parent=1 // pred_fallthru
      _
    // Predicated region
    $region6: #{tpu_custom_call.1} parent=1 // pred_check
      _
    $region7: #{tpu_custom_call.1} parent=1 // pred_check_branch
      %25 = sbr.rel (0) target = $region9
    $region8: #{tpu_custom_call.1} parent=1 // pred_region
      %27 = vsyncadd [#allocation6], 0
      %s28 = sshll.u32 %s1, 4
      %s29 = int_to_ptr.hbm [resolvable:$true] %s28
      %s30 = sshll.u32 [#allocation5], 4
      %s31 = int_to_ptr.vmem [resolvable:$true] %s30
      %36 = dma.hbm_to_vmem [thread:$0]  %s29, 1024, %s31, [#allocation6], 64, 64, 4
    $region9: #{tpu_custom_call.1} parent=1 // pred_fallthru
      _
    // Predicated region
    $region10: #{tpu_custom_call.1} parent=1 // pred_check
      _
    $region11: #{tpu_custom_call.1} parent=1 // pred_check_branch
      %38 = sbr.rel (0) target = $region13
    $region12: #{tpu_custom_call.1} parent=1 // pred_region
      _
    $region13: #{tpu_custom_call.1} parent=1 // pred_fallthru
      _
    // Predicated region
    $region14: #{tpu_custom_call.1} parent=1 // pred_check
      _
    $region15: #{tpu_custom_call.1} parent=1 // pred_check_branch
      %40 = sbr.rel (0) target = $region17
    $region16: #{tpu_custom_call.1} parent=1 // pred_region
      %42 = dma.done [#allocation3], 128
    $region17: #{tpu_custom_call.1} parent=1 // pred_fallthru
      _
    // Predicated region
    $region18: #{tpu_custom_call.1} parent=1 // pred_check
      _
    $region19: #{tpu_custom_call.1} parent=1 // pred_check_branch
      %44 = sbr.rel (0) target = $region21
    $region20: #{tpu_custom_call.1} parent=1 // pred_region
      %46 = dma.done [#allocation6], 1024
    $region21: #{tpu_custom_call.1} parent=1 // pred_fallthru
      _
    %v47 = vld [vmem:[#allocation2] sm:$0xf]
    %v48 = vld [vmem:[#allocation2 + $0x4] sm:$0xf]
    %v49 = vld [vmem:[#allocation5] sm:$0xf]
    %v50 = vld [vmem:[#allocation5 + $0x4] sm:$0xf]
    %v51 = vld [vmem:[#allocation5 + $0x8] sm:$0xf]
    %v52 = vld [vmem:[#allocation5 + $0xc] sm:$0xf]
    %v53 = vld [vmem:[#allocation5 + $0x10] sm:$0xf]
    %v54 = vld [vmem:[#allocation5 + $0x14] sm:$0xf]
    %v55 = vld [vmem:[#allocation5 + $0x18] sm:$0xf]
    %v56 = vld [vmem:[#allocation5 + $0x1c] sm:$0xf]
    %v57 = vld [vmem:[#allocation5 + $0x20] sm:$0xf]
    %v58 = vld [vmem:[#allocation5 + $0x24] sm:$0xf]
    %v59 = vld [vmem:[#allocation5 + $0x28] sm:$0xf]
    %v60 = vld [vmem:[#allocation5 + $0x2c] sm:$0xf]
    %v61 = vld [vmem:[#allocation5 + $0x30] sm:$0xf]
    %v62 = vld [vmem:[#allocation5 + $0x34] sm:$0xf]
    %v63 = vld [vmem:[#allocation5 + $0x38] sm:$0xf]
    %v64 = vld [vmem:[#allocation5 + $0x3c] sm:$0xf]
    %v65 = vld [vmem:[%s2] sm:$0x1]
    %v67 = vperm.slane %v65, 0
    %v71 = vunpack.c.l.b16 %v47
    %v72 = vunpack.c.l.b16 %v48
    %v73 = vpack.c.b16 %v72, %v71
    %v91 = vunpack.c.l.b16 %v49
    %v92 = vunpack.c.l.b16 %v50
    %v93 = vunpack.c.l.b16 %v51
    %v94 = vunpack.c.l.b16 %v52
    %v95 = vunpack.c.l.b16 %v53
    %v96 = vunpack.c.l.b16 %v54
    %v97 = vunpack.c.l.b16 %v55
    %v98 = vunpack.c.l.b16 %v56
    %v99 = vunpack.c.l.b16 %v57
    %v100 = vunpack.c.l.b16 %v58
    %v101 = vunpack.c.l.b16 %v59
    %v102 = vunpack.c.l.b16 %v60
    %v103 = vunpack.c.l.b16 %v61
    %v104 = vunpack.c.l.b16 %v62
    %v105 = vunpack.c.l.b16 %v63
    %v106 = vunpack.c.l.b16 %v64
    %v107 = vpack.c.b16 %v92, %v91
    %v108 = vpack.c.b16 %v94, %v93
    %v109 = vpack.c.b16 %v96, %v95
    %v110 = vpack.c.b16 %v98, %v97
    %v111 = vpack.c.b16 %v100, %v99
    %v112 = vpack.c.b16 %v102, %v101
    %v113 = vpack.c.b16 %v104, %v103
    %v114 = vpack.c.b16 %v106, %v105
    %123 = vmatpush.bf16.msra.mxu0 %v114
    %124 = vmatpush.bf16.msra.mxu0 %v113
    %125 = vmatpush.bf16.msra.mxu0 %v112
    %126 = vmatpush.bf16.msra.mxu0 %v111
    %127 = vmatpush.bf16.msra.mxu0 %v110
    %128 = vmatpush.bf16.msra.mxu0 %v109
    %129 = vmatpush.bf16.msra.mxu0 %v108
    %130 = vmatpush.bf16.msra.mxu0 %v107
    %131 = vmatmul.bf16.gmra.mxu0 %v73
    %v132 = vpop.f32.mrf.mxu0
    %v133 = vadd.f32 %v67, %v132
    %v134 = vpop.f32.mrf.mxu0
    %v135 = vadd.f32 %v67, %v134
    %136 = vdwg.mxu0
    %v137 = vpack.c.bf16 %v133, %v133
    %v138 = vpack.c.bf16 %v135, %v135
    %139 = vst [vmem:[#allocation7] sm:$0xf] %v137
    %140 = vst [vmem:[#allocation7 + $0x4] sm:$0xf] %v138
    // Predicated region
    $region22: #{tpu_custom_call.1} parent=1 // pred_check
      _
    $region23: #{tpu_custom_call.1} parent=1 // pred_check_branch
      %142 = sbr.rel (0) target = $region25
    $region24: #{tpu_custom_call.1} parent=1 // pred_region
      %144 = vsyncadd [#allocation4], 0
      %s145 = sshll.u32 [#allocation7], 4
      %s146 = int_to_ptr.vmem [resolvable:$true] %s145
      %s147 = sshll.u32 %s3, 4
      %s148 = int_to_ptr.hbm [resolvable:$true] %s147
      %153 = dma.vmem_to_hbm [thread:$0]  %s146, 128, %s148, [#allocation4], 64, 64, 4
    $region25: #{tpu_custom_call.1} parent=1 // pred_fallthru
      _
    // Predicated region
    $region26: #{tpu_custom_call.1} parent=1 // pred_check
      _
    $region27: #{tpu_custom_call.1} parent=1 // pred_check_branch
      %155 = sbr.rel (0) target = $region29
    $region28: #{tpu_custom_call.1} parent=1 // pred_region
      %157 = dma.done [#allocation4], 128
    $region29: #{tpu_custom_call.1} parent=1 // pred_fallthru
      _
    %158 = vsyncpa [#allocation3], 1
    %159 = vsyncpa [#allocation6], 1
    %160 = vsyncpa [#allocation4], 1

// kernel: tpu_custom_call.1
$region0: #{tpu_custom_call.1}
  #allocation0 [shape = 'u32[]', space=smem, size = 0x4, offset = 0x4, fixed_abs, tag = 'smem constant byte address 0x4 - core index']
  #allocation1 [shape = 'u32[72,128]{1,0:T(1,128)}', space=vmem, size = 0x9000, scoped, tag = 'internal scratch']
  %s0 = inlined_call_operand.hbm [shape: bf16[16,128], index: 0, kind: input, shape index: {}]
  %s1 = inlined_call_operand.hbm [shape: bf16[128,128], index: 1, kind: input, shape index: {}]
  %s2 = inlined_call_operand.vmem [shape: f32[1,128], index: 2, kind: input, shape index: {}]
  %s3 = inlined_call_operand.hbm [shape: bf16[16,128], index: 3, kind: output, shape index: {}]
  %s4 = sld [smem:[#allocation0]]
  $region30: #{tpu_custom_call.1} parent=0
    _
  %s6 = ssub.s32 1, %s4
  %s7 = scalar_select 0, %s6, %s4
  $region1: #{tpu_custom_call.1} parent=0
    #allocation2 [shape = 'u8[4096]{0}', space=vmem, size = 0x1000, scoped, tag = 'input window, operand 0, single buffered']
    #allocation3 [shape = 's32[1]{0}', space=sflag, size = 0x4, scoped, tag = 'scoped memory for tpu_custom_call.1']
    #allocation4 [shape = 's32[1]{0}', space=sflag, size = 0x4, scoped, tag = 'scoped memory for tpu_custom_call.1']
    #allocation5 [shape = 'u8[32768]{0}', space=vmem, size = 0x8000, scoped, tag = 'input window, operand 1, single buffered']
    #allocation6 [shape = 's32[1]{0}', space=sflag, size = 0x4, scoped, tag = 'scoped memory for tpu_custom_call.1']
    #allocation7 [shape = 'u8[4096]{0}', space=vmem, size = 0x1000, scoped, tag = 'output window, operand 0, single buffered']
    %8 = vsyncpa [#allocation3], 0
    %9 = vsyncpa [#allocation6], 0
    %10 = vsyncpa [#allocation4], 0
    // Predicated region
    $region2: #{tpu_custom_call.1} parent=1 // pred_check
      _
    $region3: #{tpu_custom_call.1} parent=1 // pred_check_branch
      %12 = sbr.rel (0) target = $region5
    $region4: #{tpu_custom_call.1} parent=1 // pred_region
      %14 = vsyncadd [#allocation3], 0
      %s15 = sshll.u32 %s0, 4
      %s16 = int_to_ptr.hbm [resolvable:$true] %s15
      %s17 = sshll.u32 [#allocation2], 4
      %s18 = int_to_ptr.vmem [resolvable:$true] %s17
      %23 = dma.hbm_to_vmem [thread:$0]  %s16, 128, %s18, [#allocation3], 64, 64, 4
    $region5: #{tpu_custom_call.1} parent=1 // pred_fallthru
      _
    // Predicated region
    $region6: #{tpu_custom_call.1} parent=1 // pred_check
      _
    $region7: #{tpu_custom_call.1} parent=1 // pred_check_branch
      %25 = sbr.rel (0) target = $region9
    $region8: #{tpu_custom_call.1} parent=1 // pred_region
      %27 = vsyncadd [#allocation6], 0
      %s28 = sshll.u32 %s1, 4
      %s29 = int_to_ptr.hbm [resolvable:$true] %s28
      %s30 = sshll.u32 [#allocation5], 4
      %s31 = int_to_ptr.vmem [resolvable:$true] %s30
      %36 = dma.hbm_to_vmem [thread:$0]  %s29, 1024, %s31, [#allocation6], 64, 64, 4
    $region9: #{tpu_custom_call.1} parent=1 // pred_fallthru
      _
    // Predicated region
    $region10: #{tpu_custom_call.1} parent=1 // pred_check
      _
    $region11: #{tpu_custom_call.1} parent=1 // pred_check_branch
      %38 = sbr.rel (0) target = $region13
    $region12: #{tpu_custom_call.1} parent=1 // pred_region
      _
    $region13: #{tpu_custom_call.1} parent=1 // pred_fallthru
      _
    // Predicated region
    $region14: #{tpu_custom_call.1} parent=1 // pred_check
      _
    $region15: #{tpu_custom_call.1} parent=1 // pred_check_branch
      %40 = sbr.rel (0) target = $region17
    $region16: #{tpu_custom_call.1} parent=1 // pred_region
      %42 = dma.done [#allocation3], 128
    $region17: #{tpu_custom_call.1} parent=1 // pred_fallthru
      _
    // Predicated region
    $region18: #{tpu_custom_call.1} parent=1 // pred_check
      _
    $region19: #{tpu_custom_call.1} parent=1 // pred_check_branch
      %44 = sbr.rel (0) target = $region21
    $region20: #{tpu_custom_call.1} parent=1 // pred_region
      %46 = dma.done [#allocation6], 1024
    $region21: #{tpu_custom_call.1} parent=1 // pred_fallthru
      _
    %v47 = vld [vmem:[#allocation2] sm:$0xf]
    %v48 = vld [vmem:[#allocation2 + $0x4] sm:$0xf]
    %v49 = vld [vmem:[#allocation5] sm:$0xf]
    %v50 = vld [vmem:[#allocation5 + $0x4] sm:$0xf]
    %v51 = vld [vmem:[#allocation5 + $0x8] sm:$0xf]
    %v52 = vld [vmem:[#allocation5 + $0xc] sm:$0xf]
    %v53 = vld [vmem:[#allocation5 + $0x10] sm:$0xf]
    %v54 = vld [vmem:[#allocation5 + $0x14] sm:$0xf]
    %v55 = vld [vmem:[#allocation5 + $0x18] sm:$0xf]
    %v56 = vld [vmem:[#allocation5 + $0x1c] sm:$0xf]
    %v57 = vld [vmem:[#allocation5 + $0x20] sm:$0xf]
    %v58 = vld [vmem:[#allocation5 + $0x24] sm:$0xf]
    %v59 = vld [vmem:[#allocation5 + $0x28] sm:$0xf]
    %v60 = vld [vmem:[#allocation5 + $0x2c] sm:$0xf]
    %v61 = vld [vmem:[#allocation5 + $0x30] sm:$0xf]
    %v62 = vld [vmem:[#allocation5 + $0x34] sm:$0xf]
    %v63 = vld [vmem:[#allocation5 + $0x38] sm:$0xf]
    %v64 = vld [vmem:[#allocation5 + $0x3c] sm:$0xf]
    %v65 = vld [vmem:[%s2] sm:$0x1]
    %v67 = vperm.slane %v65, 0
    %v71 = vunpack.c.l.b16 %v47
    %v72 = vunpack.c.l.b16 %v48
    %v73 = vpack.c.b16 %v72, %v71
    %v91 = vunpack.c.l.b16 %v49
    %v92 = vunpack.c.l.b16 %v50
    %v93 = vunpack.c.l.b16 %v51
    %v94 = vunpack.c.l.b16 %v52
    %v95 = vunpack.c.l.b16 %v53
    %v96 = vunpack.c.l.b16 %v54
    %v97 = vunpack.c.l.b16 %v55
    %v98 = vunpack.c.l.b16 %v56
    %v99 = vunpack.c.l.b16 %v57
    %v100 = vunpack.c.l.b16 %v58
    %v101 = vunpack.c.l.b16 %v59
    %v102 = vunpack.c.l.b16 %v60
    %v103 = vunpack.c.l.b16 %v61
    %v104 = vunpack.c.l.b16 %v62
    %v105 = vunpack.c.l.b16 %v63
    %v106 = vunpack.c.l.b16 %v64
    %v107 = vpack.c.b16 %v92, %v91
    %v108 = vpack.c.b16 %v94, %v93
    %v109 = vpack.c.b16 %v96, %v95
    %v110 = vpack.c.b16 %v98, %v97
    %v111 = vpack.c.b16 %v100, %v99
    %v112 = vpack.c.b16 %v102, %v101
    %v113 = vpack.c.b16 %v104, %v103
    %v114 = vpack.c.b16 %v106, %v105
    %123 = vmatpush.bf16.msra.mxu0 %v114
    %124 = vmatpush.bf16.msra.mxu0 %v113
    %125 = vmatpush.bf16.msra.mxu0 %v112
    %126 = vmatpush.bf16.msra.mxu0 %v111
    %127 = vmatpush.bf16.msra.mxu0 %v110
    %128 = vmatpush.bf16.msra.mxu0 %v109
    %129 = vmatpush.bf16.msra.mxu0 %v108
    %130 = vmatpush.bf16.msra.mxu0 %v107
    %131 = vmatmul.bf16.gmra.mxu0 %v73
    %v132 = vpop.f32.mrf.mxu0
    %v133 = vadd.f32 %v67, %v132
    %v134 = vpop.f32.mrf.mxu0
    %v135 = vadd.f32 %v67, %v134
    %136 = vdwg.mxu0
    %v137 = vpack.c.bf16 %v133, %v133
    %v138 = vpack.c.bf16 %v135, %v135
    %139 = vst [vmem:[#allocation7] sm:$0xf] %v137
    %140 = vst [vmem:[#allocation7 + $0x4] sm:$0xf] %v138
    // Predicated region
    $region22: #{tpu_custom_call.1} parent=1 // pred_check
      _
    $region23: #{tpu_custom_call.1} parent=1 // pred_check_branch
      %142 = sbr.rel (0) target = $region25
    $region24: #{tpu_custom_call.1} parent=1 // pred_region
      %144 = vsyncadd [#allocation4], 0
      %s145 = sshll.u32 [#allocation7], 4
      %s146 = int_to_ptr.vmem [resolvable:$true] %s145
      %s147 = sshll.u32 %s3, 4
      %s148 = int_to_ptr.hbm [resolvable:$true] %s147
      %153 = dma.vmem_to_hbm [thread:$0]  %s146, 128, %s148, [#allocation4], 64, 64, 4
    $region25: #{tpu_custom_call.1} parent=1 // pred_fallthru
      _
    // Predicated region
    $region26: #{tpu_custom_call.1} parent=1 // pred_check
      _
    $region27: #{tpu_custom_call.1} parent=1 // pred_check_branch
      %155 = sbr.rel (0) target = $region29
    $region28: #{tpu_custom_call.1} parent=1 // pred_region
      %157 = dma.done [#allocation4], 128
    $region29: #{tpu_custom_call.1} parent=1 // pred_fallthru
      _
    %158 = vsyncpa [#allocation3], 1
    %159 = vsyncpa [#allocation6], 1
    %160 = vsyncpa [#allocation4], 1

</llo_original>
